<compile_context>
chip_gen: v7x
topology: tpu7x:2x2x1
jax: 0.10.0
libtpu: 0.0.40
codegen_flags: <defaults>
</compile_context>

<pallas_src>
import functools

import jax
import jax.numpy as jnp
from jax.experimental import pallas as pl
from jax.experimental.pallas import tpu as pltpu

BN_EPS = 1e-5
LEAKY_SLOPE = 0.1


def _round_up(n, m):
    return (n + m - 1) // m * m


def _layer_dims(d_in, h, d_out):
    return [(d_in, h), (h, h), (h, h), (h, h), (h, h), (h, d_out)]


def _slab_layout(d_in, h, d_out):
    """Row offsets (sublane-aligned to 8) of each weight block and of b6 in the
    packed parameter slab, plus the slab shape."""
    dims = _layer_dims(d_in, h, d_out)
    width = max(h, d_out)
    offs = []
    r = 0
    for din, _ in dims:
        offs.append(r)
        r += _round_up(din, 8)
    b6_row = r
    total_rows = r + 8          # reserve one 8-row sublane group for b6
    return dims, offs, b6_row, total_rows, width


def pack_params(weights, b6, d_in, h, d_out):
    """Pack w1..w6 (stored (in, out) == W_pytorch.T) and b6 into one f32 slab."""
    dims, offs, b6_row, total_rows, width = _slab_layout(d_in, h, d_out)
    slab = jnp.zeros((total_rows, width), dtype=jnp.float32)
    for w, r0, (din, dout) in zip(weights, offs, dims):
        assert w.shape == (din, dout)
        slab = slab.at[r0:r0 + din, 0:dout].set(w.astype(jnp.float32))
    slab = slab.at[b6_row, 0:d_out].set(b6.reshape(-1).astype(jnp.float32))
    return slab


def _make_mlp_kernel(d_in, h, d_out):
    dims, offs, b6_row, _, _ = _slab_layout(d_in, h, d_out)

    def kernel(x_ref, p_ref, o_ref):
        x = x_ref[0]                               # (B, d_in) f32, features on lanes

        def bn_leaky(a):
            # BatchNorm1d training-mode stats (biased variance), gamma=1 /
            # beta=0 (PyTorch defaults), then LeakyReLU(0.1).
            mu = jnp.mean(a, axis=0, keepdims=True)
            c = a - mu
            var = jnp.mean(c * c, axis=0, keepdims=True)
            an = c * jax.lax.rsqrt(var + BN_EPS)
            return jnp.maximum(an, LEAKY_SLOPE * an)

        hcur = x
        for li, (r0, (din, dout)) in enumerate(zip(offs, dims)):
            w = p_ref[r0:r0 + din, 0:dout]         # static slice of the slab
            # bf16 MXU operands, f32 accumulation; activations stay f32.
            hcur = jnp.dot(hcur.astype(jnp.bfloat16), w.astype(jnp.bfloat16),
                           preferred_element_type=jnp.float32)
            if li < 5:
                # b1..b5 omitted: BN mean subtraction cancels any pre-BN bias.
                hcur = bn_leaky(hcur)

        b6 = p_ref[b6_row:b6_row + 1, 0:d_out]     # (1, d_out)
        # out6.view(B, 2, -1) + x  ==  (flattened) out6 + x_flat
        o_ref[0] = hcur + b6 + x

    return kernel


@functools.partial(jax.jit, static_argnums=(2, 3, 4))
def kernel_md_forward_batched(x, param_slab, d_in, h, d_out):
    """x: (N, B, 2, d_in//2) f32 — N independent micro-batches, BN stats
    computed per micro-batch (== applying KernelMd to each micro-batch).
    Returns (N, B, 2, d_out//2) f32. One pallas_call, grid over N."""
    N, B = x.shape[0], x.shape[1]
    assert x.shape[2] * x.shape[3] == d_in
    assert d_in == d_out, "residual add after view(B, 2, -1) needs D_in == D_out"
    x_flat = x.reshape(N, B, d_in)

    _, _, _, total_rows, width = _slab_layout(d_in, h, d_out)

    out_flat = pl.pallas_call(
        _make_mlp_kernel(d_in, h, d_out),
        out_shape=jax.ShapeDtypeStruct((N, B, d_out), jnp.float32),
        grid=(N,),
        in_specs=[
            # Per-grid-step micro-batch tile.
            pl.BlockSpec((1, B, d_in), lambda i: (i, 0, 0)),
            # Whole parameter slab, same block for every step -> DMA'd once,
            # stays VMEM-resident across the grid.
            pl.BlockSpec((total_rows, width), lambda i: (0, 0)),
        ],
        out_specs=pl.BlockSpec((1, B, d_out), lambda i: (i, 0, 0)),
        compiler_params=pltpu.CompilerParams(
            # v7x: shard micro-batches across both TensorCores.
            # v5e/v6e (1 TC): pure overhead amortization, still correct.
            dimension_semantics=("parallel",)),
    )(x_flat, param_slab)

    return out_flat.reshape(N, B, 2, d_out // 2)


def kernel_md_forward(x, param_slab, d_in, h, d_out):
    """Single micro-batch convenience wrapper: x (B, 2, d_in//2)."""
    return kernel_md_forward_batched(x[None], param_slab, d_in, h, d_out)[0]


def init_params(key, d_in, h, d_out):
    """Mirror the PyTorch init: weights ~ N(0, 0.01), biases = 0.
    Weights are stored as (in, out) == W_pytorch.T."""
    ks = jax.random.split(key, 6)
    dims = _layer_dims(d_in, h, d_out)
    weights = [0.01 * jax.random.normal(k, (din, dout), dtype=jnp.float32)
               for k, (din, dout) in zip(ks, dims)]
    biases = [jnp.zeros((dout,), dtype=jnp.float32) for (_, dout) in dims]
    return weights, biases


def reference_forward(x, weights, biases, d_in):
    """Pure-JAX f32 mirror of the PyTorch forward (training-mode BN)."""
    B = x.shape[0]
    x_flat = x.reshape(B, d_in)
    hcur = x_flat
    for li in range(6):
        hcur = hcur @ weights[li] + biases[li]
        if li < 5:
            mu = hcur.mean(axis=0, keepdims=True)
            var = ((hcur - mu) ** 2).mean(axis=0, keepdims=True)
            hcur = (hcur - mu) / jnp.sqrt(var + BN_EPS)
            hcur = jnp.where(hcur >= 0, hcur, LEAKY_SLOPE * hcur)
    return (hcur + x_flat).reshape(x.shape)


if __name__ == "__main__":
    # Forward pass requires D_in == D_out (residual add after view(B, 2, -1)).
    N, B, D_IN, H, D_OUT = 4, 8, 32, 32, 32

    key = jax.random.PRNGKey(0)
    kx, kp = jax.random.split(key)
    x = jax.random.normal(kx, (N, B, 2, D_IN // 2), dtype=jnp.float32)

    weights, biases = init_params(kp, D_IN, H, D_OUT)
    param_slab = pack_params(weights, biases[-1], D_IN, H, D_OUT)

    out = kernel_md_forward_batched(x, param_slab, D_IN, H, D_OUT)
    out = jax.block_until_ready(out)

    assert out.shape == (N, B, 2, D_OUT // 2), out.shape
    assert out.dtype == jnp.float32

    # Correctness vs. pure-JAX f32 reference (bf16 MXU operands -> loose tol).
    ref = jnp.stack([reference_forward(x[i], weights, biases, D_IN)
                     for i in range(N)])
    max_err = float(jnp.max(jnp.abs(out - ref)))
    assert max_err < 1e-1, f"max abs err vs reference: {max_err}"

    print("KERNEL_OK")
</pallas_src>

<mosaic_0001>
module attributes {stable_mosaic.version = 11 : i64} {
  func.func @kernel(%arg0: i32, %arg1: memref<1x8x32xf32, #tpu.memory_space<vmem>>, %arg2: memref<200x32xf32, #tpu.memory_space<vmem>>, %arg3: memref<1x8x32xf32, #tpu.memory_space<vmem>>) attributes {dimension_semantics = [#tpu.dimension_semantics<parallel>], iteration_bounds = array<i64: 4>, scalar_prefetch = 0 : i64, scratch_operands = 0 : i64, tpu.core_type = #tpu.core_type<tc>, window_params = [{transform_indices = @transform_0, window_bounds = array<i64: 1, 8, 32>}, {pipeline_mode = #tpu.pipeline_mode<synchronous>, transform_indices = @transform_1, window_bounds = array<i64: 200, 32>}, {transform_indices = @transform_2, window_bounds = array<i64: 1, 8, 32>}]} {
    %c0 = arith.constant 0 : index
    %c0_0 = arith.constant 0 : index
    %c0_1 = arith.constant 0 : index
    %0 = vector.load %arg1[%c0, %c0_0, %c0_1] : memref<1x8x32xf32, #tpu.memory_space<vmem>>, vector<1x8x32xf32>
    %1 = vector.shape_cast %0 : vector<1x8x32xf32> to vector<8x32xf32>
    %c0_2 = arith.constant 0 : index
    %c0_3 = arith.constant 0 : index
    %2 = vector.load %arg2[%c0_2, %c0_3] : memref<200x32xf32, #tpu.memory_space<vmem>>, vector<32x32xf32>
    %3 = arith.truncf %1 : vector<8x32xf32> to vector<8x32xbf16>
    %4 = arith.truncf %2 : vector<32x32xf32> to vector<32x32xbf16>
    %cst = arith.constant dense<0.000000e+00> : vector<8x32xf32>
    %5 = tpu.matmul %3, %4, %cst {dimension_numbers = #tpu.dot_dimension_numbers<[1], [0], [0], [1], [0, 0, 1, 1], [], []>} : vector<8x32xbf16>, vector<32x32xbf16>, vector<8x32xf32> -> vector<8x32xf32>
    %cst_4 = arith.constant dense<0.000000e+00> : vector<32xf32>
    %6 = vector.multi_reduction <add>, %5, %cst_4 [0] : vector<8x32xf32> to vector<32xf32>
    %7 = vector.shape_cast %6 : vector<32xf32> to vector<1x32xf32>
    %cst_5 = arith.constant 8.000000e+00 : f32
    %8 = vector.broadcast %cst_5 : f32 to vector<1x32xf32>
    %9 = arith.divf %7, %8 : vector<1x32xf32>
    %10 = vector.broadcast %9 : vector<1x32xf32> to vector<8x32xf32>
    %11 = arith.subf %5, %10 : vector<8x32xf32>
    %12 = arith.mulf %11, %11 : vector<8x32xf32>
    %cst_6 = arith.constant dense<0.000000e+00> : vector<32xf32>
    %13 = vector.multi_reduction <add>, %12, %cst_6 [0] : vector<8x32xf32> to vector<32xf32>
    %14 = vector.shape_cast %13 : vector<32xf32> to vector<1x32xf32>
    %cst_7 = arith.constant 8.000000e+00 : f32
    %15 = vector.broadcast %cst_7 : f32 to vector<1x32xf32>
    %16 = arith.divf %14, %15 : vector<1x32xf32>
    %cst_8 = arith.constant 9.99999974E-6 : f32
    %17 = vector.broadcast %cst_8 : f32 to vector<1x32xf32>
    %18 = arith.addf %16, %17 : vector<1x32xf32>
    %19 = math.rsqrt %18 : vector<1x32xf32>
    %20 = vector.broadcast %19 : vector<1x32xf32> to vector<8x32xf32>
    %21 = arith.mulf %11, %20 : vector<8x32xf32>
    %cst_9 = arith.constant 1.000000e-01 : f32
    %22 = vector.broadcast %cst_9 : f32 to vector<8x32xf32>
    %23 = arith.mulf %22, %21 : vector<8x32xf32>
    %24 = arith.maximumf %21, %23 : vector<8x32xf32>
    %c32 = arith.constant 32 : index
    %c0_10 = arith.constant 0 : index
    %25 = vector.load %arg2[%c32, %c0_10] : memref<200x32xf32, #tpu.memory_space<vmem>>, vector<32x32xf32>
    %26 = arith.truncf %24 : vector<8x32xf32> to vector<8x32xbf16>
    %27 = arith.truncf %25 : vector<32x32xf32> to vector<32x32xbf16>
    %cst_11 = arith.constant dense<0.000000e+00> : vector<8x32xf32>
    %28 = tpu.matmul %26, %27, %cst_11 {dimension_numbers = #tpu.dot_dimension_numbers<[1], [0], [0], [1], [0, 0, 1, 1], [], []>} : vector<8x32xbf16>, vector<32x32xbf16>, vector<8x32xf32> -> vector<8x32xf32>
    %cst_12 = arith.constant dense<0.000000e+00> : vector<32xf32>
    %29 = vector.multi_reduction <add>, %28, %cst_12 [0] : vector<8x32xf32> to vector<32xf32>
    %30 = vector.shape_cast %29 : vector<32xf32> to vector<1x32xf32>
    %cst_13 = arith.constant 8.000000e+00 : f32
    %31 = vector.broadcast %cst_13 : f32 to vector<1x32xf32>
    %32 = arith.divf %30, %31 : vector<1x32xf32>
    %33 = vector.broadcast %32 : vector<1x32xf32> to vector<8x32xf32>
    %34 = arith.subf %28, %33 : vector<8x32xf32>
    %35 = arith.mulf %34, %34 : vector<8x32xf32>
    %cst_14 = arith.constant dense<0.000000e+00> : vector<32xf32>
    %36 = vector.multi_reduction <add>, %35, %cst_14 [0] : vector<8x32xf32> to vector<32xf32>
    %37 = vector.shape_cast %36 : vector<32xf32> to vector<1x32xf32>
    %cst_15 = arith.constant 8.000000e+00 : f32
    %38 = vector.broadcast %cst_15 : f32 to vector<1x32xf32>
    %39 = arith.divf %37, %38 : vector<1x32xf32>
    %cst_16 = arith.constant 9.99999974E-6 : f32
    %40 = vector.broadcast %cst_16 : f32 to vector<1x32xf32>
    %41 = arith.addf %39, %40 : vector<1x32xf32>
    %42 = math.rsqrt %41 : vector<1x32xf32>
    %43 = vector.broadcast %42 : vector<1x32xf32> to vector<8x32xf32>
    %44 = arith.mulf %34, %43 : vector<8x32xf32>
    %cst_17 = arith.constant 1.000000e-01 : f32
    %45 = vector.broadcast %cst_17 : f32 to vector<8x32xf32>
    %46 = arith.mulf %45, %44 : vector<8x32xf32>
    %47 = arith.maximumf %44, %46 : vector<8x32xf32>
    %c64 = arith.constant 64 : index
    %c0_18 = arith.constant 0 : index
    %48 = vector.load %arg2[%c64, %c0_18] : memref<200x32xf32, #tpu.memory_space<vmem>>, vector<32x32xf32>
    %49 = arith.truncf %47 : vector<8x32xf32> to vector<8x32xbf16>
    %50 = arith.truncf %48 : vector<32x32xf32> to vector<32x32xbf16>
    %cst_19 = arith.constant dense<0.000000e+00> : vector<8x32xf32>
    %51 = tpu.matmul %49, %50, %cst_19 {dimension_numbers = #tpu.dot_dimension_numbers<[1], [0], [0], [1], [0, 0, 1, 1], [], []>} : vector<8x32xbf16>, vector<32x32xbf16>, vector<8x32xf32> -> vector<8x32xf32>
    %cst_20 = arith.constant dense<0.000000e+00> : vector<32xf32>
    %52 = vector.multi_reduction <add>, %51, %cst_20 [0] : vector<8x32xf32> to vector<32xf32>
    %53 = vector.shape_cast %52 : vector<32xf32> to vector<1x32xf32>
    %cst_21 = arith.constant 8.000000e+00 : f32
    %54 = vector.broadcast %cst_21 : f32 to vector<1x32xf32>
    %55 = arith.divf %53, %54 : vector<1x32xf32>
    %56 = vector.broadcast %55 : vector<1x32xf32> to vector<8x32xf32>
    %57 = arith.subf %51, %56 : vector<8x32xf32>
    %58 = arith.mulf %57, %57 : vector<8x32xf32>
    %cst_22 = arith.constant dense<0.000000e+00> : vector<32xf32>
    %59 = vector.multi_reduction <add>, %58, %cst_22 [0] : vector<8x32xf32> to vector<32xf32>
    %60 = vector.shape_cast %59 : vector<32xf32> to vector<1x32xf32>
    %cst_23 = arith.constant 8.000000e+00 : f32
    %61 = vector.broadcast %cst_23 : f32 to vector<1x32xf32>
    %62 = arith.divf %60, %61 : vector<1x32xf32>
    %cst_24 = arith.constant 9.99999974E-6 : f32
    %63 = vector.broadcast %cst_24 : f32 to vector<1x32xf32>
    %64 = arith.addf %62, %63 : vector<1x32xf32>
    %65 = math.rsqrt %64 : vector<1x32xf32>
    %66 = vector.broadcast %65 : vector<1x32xf32> to vector<8x32xf32>
    %67 = arith.mulf %57, %66 : vector<8x32xf32>
    %cst_25 = arith.constant 1.000000e-01 : f32
    %68 = vector.broadcast %cst_25 : f32 to vector<8x32xf32>
    %69 = arith.mulf %68, %67 : vector<8x32xf32>
    %70 = arith.maximumf %67, %69 : vector<8x32xf32>
    %c96 = arith.constant 96 : index
    %c0_26 = arith.constant 0 : index
    %71 = vector.load %arg2[%c96, %c0_26] : memref<200x32xf32, #tpu.memory_space<vmem>>, vector<32x32xf32>
    %72 = arith.truncf %70 : vector<8x32xf32> to vector<8x32xbf16>
    %73 = arith.truncf %71 : vector<32x32xf32> to vector<32x32xbf16>
    %cst_27 = arith.constant dense<0.000000e+00> : vector<8x32xf32>
    %74 = tpu.matmul %72, %73, %cst_27 {dimension_numbers = #tpu.dot_dimension_numbers<[1], [0], [0], [1], [0, 0, 1, 1], [], []>} : vector<8x32xbf16>, vector<32x32xbf16>, vector<8x32xf32> -> vector<8x32xf32>
    %cst_28 = arith.constant dense<0.000000e+00> : vector<32xf32>
    %75 = vector.multi_reduction <add>, %74, %cst_28 [0] : vector<8x32xf32> to vector<32xf32>
    %76 = vector.shape_cast %75 : vector<32xf32> to vector<1x32xf32>
    %cst_29 = arith.constant 8.000000e+00 : f32
    %77 = vector.broadcast %cst_29 : f32 to vector<1x32xf32>
    %78 = arith.divf %76, %77 : vector<1x32xf32>
    %79 = vector.broadcast %78 : vector<1x32xf32> to vector<8x32xf32>
    %80 = arith.subf %74, %79 : vector<8x32xf32>
    %81 = arith.mulf %80, %80 : vector<8x32xf32>
    %cst_30 = arith.constant dense<0.000000e+00> : vector<32xf32>
    %82 = vector.multi_reduction <add>, %81, %cst_30 [0] : vector<8x32xf32> to vector<32xf32>
    %83 = vector.shape_cast %82 : vector<32xf32> to vector<1x32xf32>
    %cst_31 = arith.constant 8.000000e+00 : f32
    %84 = vector.broadcast %cst_31 : f32 to vector<1x32xf32>
    %85 = arith.divf %83, %84 : vector<1x32xf32>
    %cst_32 = arith.constant 9.99999974E-6 : f32
    %86 = vector.broadcast %cst_32 : f32 to vector<1x32xf32>
    %87 = arith.addf %85, %86 : vector<1x32xf32>
    %88 = math.rsqrt %87 : vector<1x32xf32>
    %89 = vector.broadcast %88 : vector<1x32xf32> to vector<8x32xf32>
    %90 = arith.mulf %80, %89 : vector<8x32xf32>
    %cst_33 = arith.constant 1.000000e-01 : f32
    %91 = vector.broadcast %cst_33 : f32 to vector<8x32xf32>
    %92 = arith.mulf %91, %90 : vector<8x32xf32>
    %93 = arith.maximumf %90, %92 : vector<8x32xf32>
    %c128 = arith.constant 128 : index
    %c0_34 = arith.constant 0 : index
    %94 = vector.load %arg2[%c128, %c0_34] : memref<200x32xf32, #tpu.memory_space<vmem>>, vector<32x32xf32>
    %95 = arith.truncf %93 : vector<8x32xf32> to vector<8x32xbf16>
    %96 = arith.truncf %94 : vector<32x32xf32> to vector<32x32xbf16>
    %cst_35 = arith.constant dense<0.000000e+00> : vector<8x32xf32>
    %97 = tpu.matmul %95, %96, %cst_35 {dimension_numbers = #tpu.dot_dimension_numbers<[1], [0], [0], [1], [0, 0, 1, 1], [], []>} : vector<8x32xbf16>, vector<32x32xbf16>, vector<8x32xf32> -> vector<8x32xf32>
    %cst_36 = arith.constant dense<0.000000e+00> : vector<32xf32>
    %98 = vector.multi_reduction <add>, %97, %cst_36 [0] : vector<8x32xf32> to vector<32xf32>
    %99 = vector.shape_cast %98 : vector<32xf32> to vector<1x32xf32>
    %cst_37 = arith.constant 8.000000e+00 : f32
    %100 = vector.broadcast %cst_37 : f32 to vector<1x32xf32>
    %101 = arith.divf %99, %100 : vector<1x32xf32>
    %102 = vector.broadcast %101 : vector<1x32xf32> to vector<8x32xf32>
    %103 = arith.subf %97, %102 : vector<8x32xf32>
    %104 = arith.mulf %103, %103 : vector<8x32xf32>
    %cst_38 = arith.constant dense<0.000000e+00> : vector<32xf32>
    %105 = vector.multi_reduction <add>, %104, %cst_38 [0] : vector<8x32xf32> to vector<32xf32>
    %106 = vector.shape_cast %105 : vector<32xf32> to vector<1x32xf32>
    %cst_39 = arith.constant 8.000000e+00 : f32
    %107 = vector.broadcast %cst_39 : f32 to vector<1x32xf32>
    %108 = arith.divf %106, %107 : vector<1x32xf32>
    %cst_40 = arith.constant 9.99999974E-6 : f32
    %109 = vector.broadcast %cst_40 : f32 to vector<1x32xf32>
    %110 = arith.addf %108, %109 : vector<1x32xf32>
    %111 = math.rsqrt %110 : vector<1x32xf32>
    %112 = vector.broadcast %111 : vector<1x32xf32> to vector<8x32xf32>
    %113 = arith.mulf %103, %112 : vector<8x32xf32>
    %cst_41 = arith.constant 1.000000e-01 : f32
    %114 = vector.broadcast %cst_41 : f32 to vector<8x32xf32>
    %115 = arith.mulf %114, %113 : vector<8x32xf32>
    %116 = arith.maximumf %113, %115 : vector<8x32xf32>
    %c160 = arith.constant 160 : index
    %c0_42 = arith.constant 0 : index
    %117 = vector.load %arg2[%c160, %c0_42] : memref<200x32xf32, #tpu.memory_space<vmem>>, vector<32x32xf32>
    %118 = arith.truncf %116 : vector<8x32xf32> to vector<8x32xbf16>
    %119 = arith.truncf %117 : vector<32x32xf32> to vector<32x32xbf16>
    %cst_43 = arith.constant dense<0.000000e+00> : vector<8x32xf32>
    %120 = tpu.matmul %118, %119, %cst_43 {dimension_numbers = #tpu.dot_dimension_numbers<[1], [0], [0], [1], [0, 0, 1, 1], [], []>} : vector<8x32xbf16>, vector<32x32xbf16>, vector<8x32xf32> -> vector<8x32xf32>
    %c192 = arith.constant 192 : index
    %c0_44 = arith.constant 0 : index
    %121 = vector.load %arg2[%c192, %c0_44] : memref<200x32xf32, #tpu.memory_space<vmem>>, vector<1x32xf32>
    %122 = vector.broadcast %121 : vector<1x32xf32> to vector<8x32xf32>
    %123 = arith.addf %120, %122 : vector<8x32xf32>
    %124 = arith.addf %123, %1 : vector<8x32xf32>
    %c0_45 = arith.constant 0 : index
    %c0_46 = arith.constant 0 : index
    %c0_47 = arith.constant 0 : index
    %125 = vector.load %arg3[%c0_45, %c0_46, %c0_47] : memref<1x8x32xf32, #tpu.memory_space<vmem>>, vector<1x8x32xf32>
    %126 = vector.shape_cast %125 : vector<1x8x32xf32> to vector<8x32xf32>
    %127 = vector.shape_cast %124 : vector<8x32xf32> to vector<1x8x32xf32>
    tpu.vector_store %arg3[%c0_45, %c0_46, %c0_47], %127 {strides = array<i32>} : memref<1x8x32xf32, #tpu.memory_space<vmem>>, vector<1x8x32xf32>,
    return
  }
  func.func @transform_0(%arg0: i32) -> (i32, i32, i32) {
    %c0_i32 = arith.constant 0 : i32
    %c0_i32_0 = arith.constant 0 : i32
    %c0_i32_1 = arith.constant 0 : i32
    return %arg0, %c0_i32, %c0_i32_0 : i32, i32, i32
  }
  func.func @transform_1(%arg0: i32) -> (i32, i32) {
    %c0_i32 = arith.constant 0 : i32
    %c0_i32_0 = arith.constant 0 : i32
    %c0_i32_1 = arith.constant 0 : i32
    return %c0_i32, %c0_i32_0 : i32, i32
  }
  func.func @transform_2(%arg0: i32) -> (i32, i32, i32) {
    %c0_i32 = arith.constant 0 : i32
    %c0_i32_0 = arith.constant 0 : i32
    %c0_i32_1 = arith.constant 0 : i32
    return %arg0, %c0_i32, %c0_i32_0 : i32, i32, i32
  }
}

</mosaic_0001>

<llo_original>
// kernel: kernel_md_forward_batched.1
$region0: #{kernel_md_forward_batched.1}
  #allocation0 [shape = 'u32[]', space=smem, size = 0x4, offset = 0x4, fixed_abs, tag = 'smem constant byte address 0x4 - core index']
  #allocation1 [shape = 'u32[144,128]{1,0:T(1,128)}', space=vmem, size = 0x12000, scoped, tag = 'internal scratch']
  %s0 = inlined_call_operand.vmem [shape: f32[4,8,32], index: 0, kind: input, shape index: {}]
  %s1 = inlined_call_operand.vmem [shape: f32[200,32], index: 1, kind: input, shape index: {}]
  %s2 = inlined_call_operand.vmem [shape: f32[4,8,32], index: 2, kind: output, shape index: {}]
  %s3 = sld [smem:[#allocation0]]
  $region41: #{kernel_md_forward_batched.1} parent=0
    _
  %s5 = ssub.s32 1, %s3
  %s6 = scalar_select 0, %s5, %s3
  loop: start=0, step=1, limit=6
  $region2: #{kernel_md_forward_batched.1} parent=0 // loop_pre_header
    _
  $region3: #{kernel_md_forward_batched.1} parent=0 // loop_header
    %s8 = sphi 0, %s12
    %p9 = scmp.ge.s32.totalorder %s8, 6
    %s18 = sphi 0, %s20
    %s21 = sphi 0, %s18
    %s22 = sphi 0, %s21
    %s38 = sphi 0, %s22
    %s42 = sphi 0, %s42
    %s44 = sphi 0, %s42
    %s45 = sphi 0, %s44
    %s59 = sphi 0, %s45
    %s65 = sphi 0, %s67
    %s68 = sphi 0, %s65
    %s69 = sphi 0, %s68
    %s85 = sphi 0, %s69
  $region4: #{kernel_md_forward_batched.1} parent=0 // loop_header_branch
    %11 = sbr.rel (%p9) target = $region8
  $region5: #{kernel_md_forward_batched.1} parent=0 // loop_body
    %s13 = ssub.s32 %s8, 1
    %s14 = ssub.s32 %s8, 2
    %s15 = sadd.s32 %s8, 1
    %s16 = ssub.s32 %s8, %s15
    %p17 = scmp.eq.s32.totalorder %s16, 0
    %s19 = sadd.s32 %s18, 1
    %s20 = scalar_select %p17, %s18, %s19
    %p23 = pneg %p17
    %p24 = scmp.eq.s32.totalorder %s8, 3
    %p25 = por %p23, %p24
    %p26 = scmp.ne.s32.totalorder %s18, %s21
    %p27 = scmp.eq.s32.totalorder %s8, 0
    %p28 = por %p26, %p27
    %p29 = scmp.ne.s32.totalorder %s18, %s21
    %p30 = scmp.eq.s32.totalorder %s13, 3
    %p31 = por %p29, %p30
    %p32 = scmp.ne.s32.totalorder %s21, %s22
    %p33 = scmp.eq.s32.totalorder %s13, 0
    %p34 = por %p32, %p33
    %p35 = scmp.ne.s32.totalorder %s21, %s22
    %p36 = scmp.eq.s32.totalorder %s14, 3
    %p37 = por %p35, %p36
    %p39 = scmp.ne.s32.totalorder %s22, %s38
    %p40 = scmp.eq.s32.totalorder %s14, 0
    %p41 = por %p39, %p40
    %s43 = sadd.s32 %s42, 1
    %p46 = scmp.eq.s32.totalorder %s8, 3
    %p47 = scmp.ne.s32.totalorder %s42, %s44
    %p48 = scmp.eq.s32.totalorder %s8, 0
    %p49 = por %p47, %p48
    %p50 = scmp.ne.s32.totalorder %s42, %s44
    %p51 = scmp.eq.s32.totalorder %s13, 3
    %p52 = por %p50, %p51
    %p53 = scmp.ne.s32.totalorder %s44, %s45
    %p54 = scmp.eq.s32.totalorder %s13, 0
    %p55 = por %p53, %p54
    %p56 = scmp.ne.s32.totalorder %s44, %s45
    %p57 = scmp.eq.s32.totalorder %s14, 3
    %p58 = por %p56, %p57
    %p60 = scmp.ne.s32.totalorder %s45, %s59
    %p61 = scmp.eq.s32.totalorder %s14, 0
    %p62 = por %p60, %p61
    %s63 = ssub.s32 %s8, %s15
    %p64 = scmp.eq.s32.totalorder %s63, 0
    %s66 = sadd.s32 %s65, 1
    %s67 = scalar_select %p64, %s65, %s66
    %p70 = pneg %p64
    %p71 = scmp.eq.s32.totalorder %s8, 3
    %p72 = por %p70, %p71
    %p73 = scmp.ne.s32.totalorder %s65, %s68
    %p74 = scmp.eq.s32.totalorder %s8, 0
    %p75 = por %p73, %p74
    %p76 = scmp.ne.s32.totalorder %s65, %s68
    %p77 = scmp.eq.s32.totalorder %s13, 3
    %p78 = por %p76, %p77
    %p79 = scmp.ne.s32.totalorder %s68, %s69
    %p80 = scmp.eq.s32.totalorder %s13, 0
    %p81 = por %p79, %p80
    %p82 = scmp.ne.s32.totalorder %s68, %s69
    %p83 = scmp.eq.s32.totalorder %s14, 3
    %p84 = por %p82, %p83
    %p86 = scmp.ne.s32.totalorder %s69, %s85
    %p87 = scmp.eq.s32.totalorder %s14, 0
    %p88 = por %p86, %p87
    %p89 = scmp.le.s32.totalorder 1, %s8
    %p90 = scmp.lt.s32.totalorder %s8, 5
    %p91 = pnand %p89, %p90
    %p92 = pneg %p91
    // Predicated region
    $region9: #{kernel_md_forward_batched.1} parent=5 // pred_check
      _
    $region10: #{kernel_md_forward_batched.1} parent=5 // pred_check_branch
      %94 = sbr.rel (%p91) target = $region12
    $region11: #{kernel_md_forward_batched.1} parent=5 // pred_region
      %s95 = ssub.s32 %s8, 1
      // Predicated region
      $region13: #{kernel_md_forward_batched.1} parent=11 // pred_check
        %p96 = pneg %p55
      $region14: #{kernel_md_forward_batched.1} parent=11 // pred_check_branch
        %98 = sbr.rel (%p96) target = $region16
      $region15: #{kernel_md_forward_batched.1} parent=11 // pred_region
        _
      $region16: #{kernel_md_forward_batched.1} parent=11 // pred_fallthru
        _
    $region12: #{kernel_md_forward_batched.1} parent=5 // pred_fallthru
      _
    %p99 = scmp.lt.s32.totalorder %s8, 4
    // Predicated region
    $region17: #{kernel_md_forward_batched.1} parent=5 // pred_check
      %p100 = pneg %p99
    $region18: #{kernel_md_forward_batched.1} parent=5 // pred_check_branch
      %102 = sbr.rel (%p100) target = $region20
    $region19: #{kernel_md_forward_batched.1} parent=5 // pred_region
      // Predicated region
      $region21: #{kernel_md_forward_batched.1} parent=19 // pred_check
        %p103 = pneg %p28
      $region22: #{kernel_md_forward_batched.1} parent=19 // pred_check_branch
        %105 = sbr.rel (%p103) target = $region24
      $region23: #{kernel_md_forward_batched.1} parent=19 // pred_region
        %p106 = scmp.lt.s32.totalorder %s8, 3
        %s107 = scalar_select %p106, %s8, 3
        %s108 = smul.addr %s107, 8
        %s109 = scalar_lea.vmem %s0, %s108
      $region24: #{kernel_md_forward_batched.1} parent=19 // pred_fallthru
        _
    $region20: #{kernel_md_forward_batched.1} parent=5 // pred_fallthru
      _
    %p110 = scmp.le.s32.totalorder 1, %s8
    %p111 = scmp.lt.s32.totalorder %s8, 5
    %p112 = pnand %p110, %p111
    %p113 = pneg %p112
    // Predicated region
    $region25: #{kernel_md_forward_batched.1} parent=5 // pred_check
      _
    $region26: #{kernel_md_forward_batched.1} parent=5 // pred_check_branch
      %115 = sbr.rel (%p112) target = $region28
    $region27: #{kernel_md_forward_batched.1} parent=5 // pred_region
      %s116 = ssub.s32 %s8, 1
      %p117 = scmp.lt.s32.totalorder %s13, 3
      %s118 = scalar_select %p117, %s13, 3
      %s119 = smul.addr %s118, 8
      %s120 = scalar_lea.vmem %s0, %s119
      %p121 = pneg %p34
      %p122 = pneg %p31
      %p123 = pneg %p55
      %p124 = pneg %p52
      %p125 = pneg %p81
      %p126 = pneg %p78
      %p127 = scmp.lt.s32.totalorder %s13, 3
      %s128 = scalar_select %p127, %s13, 3
      %s129 = smul.addr %s128, 8
      %s130 = scalar_lea.vmem %s2, %s129
      %p131 = scmp.lt.s32.totalorder %s13, 3
      %s132 = scalar_select %p131, %s13, 3
      %s133 = smul.addr %s132, 8
      %s134 = scalar_lea.vmem %s0, %s133
      %p135 = scmp.lt.s32.totalorder %s13, 3
      %s136 = scalar_select %p135, %s13, 3
      %s137 = smul.addr %s136, 8
      %s138 = scalar_lea.vmem %s2, %s137
      %v140 = vld [vmem:[%s134] sm:$0xff]
      %v141 = vld [vmem:[%s1] sm:$0xff]
      %v142 = vld [vmem:[%s1 + $0x8] sm:$0xff]
      %v143 = vld [vmem:[%s1 + $0x10] sm:$0xff]
      %v144 = vld [vmem:[%s1 + $0x18] sm:$0xff]
      %v145 = vpack.c.bf16 %v140, %v140
      %v146 = vpack.c.bf16 %v142, %v141
      %v147 = vpack.c.bf16 %v144, %v143
      %vm148 = vcmask 261120
      %v150 = vsel %vm148, %v145, 0
      %152 = vmatprep.subr.bf16.mxu0 0
      %153 = vmatpush1.bf16.msra.mxu0 %v146
      %154 = vmatprep.subr.bf16.mxu0 0
      %155 = vmatpush1.bf16.msra.mxu0 %v147
      %156 = vmatprep.subr.bf16.mxu0 0
      %157 = vmatpush1.bf16.msra.mxu0 0
      %158 = vmatprep.subr.bf16.mxu0 0
      %159 = vmatpush1.bf16.msra.mxu0 0
      %160 = vmatprep.subr.bf16.mxu0 0
      %161 = vmatpush1.bf16.msra.mxu0 0
      %162 = vmatprep.subr.bf16.mxu0 0
      %163 = vmatpush1.bf16.msra.mxu0 0
      %164 = vmatprep.subr.bf16.mxu0 0
      %165 = vmatpush1.bf16.msra.mxu0 0
      %166 = vmatprep.subr.bf16.mxu0 0
      %167 = vmatpush1.bf16.msra.mxu0 0
      %168 = vmatprep.subr.bf16.mxu0 0
      %169 = vmatpush1.bf16.msra.mxu0 0
      %170 = vmatprep.subr.bf16.mxu0 0
      %171 = vmatpush1.bf16.msra.mxu0 0
      %172 = vmatprep.subr.bf16.mxu0 0
      %173 = vmatpush1.bf16.msra.mxu0 0
      %174 = vmatprep.subr.bf16.mxu0 0
      %175 = vmatpush1.bf16.msra.mxu0 0
      %176 = vmatprep.subr.bf16.mxu0 0
      %177 = vmatpush1.bf16.msra.mxu0 0
      %178 = vmatprep.subr.bf16.mxu0 0
      %179 = vmatpush1.bf16.msra.mxu0 0
      %180 = vmatprep.subr.bf16.mxu0 0
      %181 = vmatpush1.bf16.msra.mxu0 0
      %182 = vmatprep.subr.bf16.mxu0 0
      %183 = vmatpush1.bf16.msra.mxu0 0
      %184 = vmatprep.mubr.bf16.mxu0 0
      %185 = vmatmul.mubr.bf16.gmra.mrb[0].mxu0 %v150
      %v186 = vpop.f32.mrb[0].mxu0
      %v187 = vadd.f32 0.0, %v186
      %v188 = vpop.f32.mrb[0].mxu0
      %v189 = vpop.f32.mrb[0].mxu0
      %v190 = vpop.f32.mrb[0].mxu0
      %191 = vdwg.mxu0
      %v192 = vsel %vm148, %v187, 0.0
      %v193 = vrot.slane %v192, 4
      %v194 = vadd.f32 %v192, %v193
      %v195 = vrot.slane %v194, 2
      %v196 = vadd.f32 %v194, %v195
      %v197 = vrot.slane %v196, 1
      %v198 = vadd.f32 %v196, %v197
      %v199 = vrcp.pop 8.0
      %v200 = vmul.f32 %v198, %v199
      %v201 = vsub.f32 %v187, %v200
      %v202 = vmul.f32 %v201, %v201
      %v203 = vsel %vm148, %v202, 0.0
      %v204 = vrot.slane %v203, 4
      %v205 = vadd.f32 %v203, %v204
      %v206 = vrot.slane %v205, 2
      %v207 = vadd.f32 %v205, %v206
      %v208 = vrot.slane %v207, 1
      %v209 = vadd.f32 %v207, %v208
      %v210 = vmul.f32 %v209, %v199
      %v211 = vadd.f32 %v210, 1e-05
      %v212 = vrsqrt.pop %v211
      %v213 = vmul.f32 %v201, %v212
      %v214 = vmul.f32 %v213, 0.1
      %v215 = vmax.f32 %v213, %v214
      %v216 = vld [vmem:[%s1 + $0x20] sm:$0xff]
      %v217 = vld [vmem:[%s1 + $0x28] sm:$0xff]
      %v218 = vld [vmem:[%s1 + $0x30] sm:$0xff]
      %v219 = vld [vmem:[%s1 + $0x38] sm:$0xff]
      %v220 = vpack.c.bf16 %v215, %v215
      %v221 = vpack.c.bf16 %v217, %v216
      %v222 = vpack.c.bf16 %v219, %v218
      %v224 = vsel %vm148, %v220, 0
      %226 = vmatprep.subr.bf16.mxu0 0
      %227 = vmatpush1.bf16.msra.mxu0 %v221
      %228 = vmatprep.subr.bf16.mxu0 0
      %229 = vmatpush1.bf16.msra.mxu0 %v222
      %230 = vmatprep.subr.bf16.mxu0 0
      %231 = vmatpush1.bf16.msra.mxu0 0
      %232 = vmatprep.subr.bf16.mxu0 0
      %233 = vmatpush1.bf16.msra.mxu0 0
      %234 = vmatprep.subr.bf16.mxu0 0
      %235 = vmatpush1.bf16.msra.mxu0 0
      %236 = vmatprep.subr.bf16.mxu0 0
      %237 = vmatpush1.bf16.msra.mxu0 0
      %238 = vmatprep.subr.bf16.mxu0 0
      %239 = vmatpush1.bf16.msra.mxu0 0
      %240 = vmatprep.subr.bf16.mxu0 0
      %241 = vmatpush1.bf16.msra.mxu0 0
      %242 = vmatprep.subr.bf16.mxu0 0
      %243 = vmatpush1.bf16.msra.mxu0 0
      %244 = vmatprep.subr.bf16.mxu0 0
      %245 = vmatpush1.bf16.msra.mxu0 0
      %246 = vmatprep.subr.bf16.mxu0 0
      %247 = vmatpush1.bf16.msra.mxu0 0
      %248 = vmatprep.subr.bf16.mxu0 0
      %249 = vmatpush1.bf16.msra.mxu0 0
      %250 = vmatprep.subr.bf16.mxu0 0
      %251 = vmatpush1.bf16.msra.mxu0 0
      %252 = vmatprep.subr.bf16.mxu0 0
      %253 = vmatpush1.bf16.msra.mxu0 0
      %254 = vmatprep.subr.bf16.mxu0 0
      %255 = vmatpush1.bf16.msra.mxu0 0
      %256 = vmatprep.subr.bf16.mxu0 0
      %257 = vmatpush1.bf16.msra.mxu0 0
      %258 = vmatprep.mubr.bf16.mxu0 0
      %259 = vmatmul.mubr.bf16.gmra.mrb[0].mxu0 %v224
      %v260 = vpop.f32.mrb[0].mxu0
      %v261 = vadd.f32 0.0, %v260
      %v262 = vpop.f32.mrb[0].mxu0
      %v263 = vpop.f32.mrb[0].mxu0
      %v264 = vpop.f32.mrb[0].mxu0
      %265 = vdwg.mxu0
      %v266 = vsel %vm148, %v261, 0.0
      %v267 = vrot.slane %v266, 4
      %v268 = vadd.f32 %v266, %v267
      %v269 = vrot.slane %v268, 2
      %v270 = vadd.f32 %v268, %v269
      %v271 = vrot.slane %v270, 1
      %v272 = vadd.f32 %v270, %v271
      %v273 = vmul.f32 %v272, %v199
      %v274 = vsub.f32 %v261, %v273
      %v275 = vmul.f32 %v274, %v274
      %v276 = vsel %vm148, %v275, 0.0
      %v277 = vrot.slane %v276, 4
      %v278 = vadd.f32 %v276, %v277
      %v279 = vrot.slane %v278, 2
      %v280 = vadd.f32 %v278, %v279
      %v281 = vrot.slane %v280, 1
      %v282 = vadd.f32 %v280, %v281
      %v283 = vmul.f32 %v282, %v199
      %v284 = vadd.f32 %v283, 1e-05
      %v285 = vrsqrt.pop %v284
      %v286 = vmul.f32 %v274, %v285
      %v287 = vmul.f32 %v286, 0.1
      %v288 = vmax.f32 %v286, %v287
      %v289 = vld [vmem:[%s1 + $0x40] sm:$0xff]
      %v290 = vld [vmem:[%s1 + $0x48] sm:$0xff]
      %v291 = vld [vmem:[%s1 + $0x50] sm:$0xff]
      %v292 = vld [vmem:[%s1 + $0x58] sm:$0xff]
      %v293 = vpack.c.bf16 %v288, %v288
      %v294 = vpack.c.bf16 %v290, %v289
      %v295 = vpack.c.bf16 %v292, %v291
      %v297 = vsel %vm148, %v293, 0
      %299 = vmatprep.subr.bf16.mxu0 0
      %300 = vmatpush1.bf16.msra.mxu0 %v294
      %301 = vmatprep.subr.bf16.mxu0 0
      %302 = vmatpush1.bf16.msra.mxu0 %v295
      %303 = vmatprep.subr.bf16.mxu0 0
      %304 = vmatpush1.bf16.msra.mxu0 0
      %305 = vmatprep.subr.bf16.mxu0 0
      %306 = vmatpush1.bf16.msra.mxu0 0
      %307 = vmatprep.subr.bf16.mxu0 0
      %308 = vmatpush1.bf16.msra.mxu0 0
      %309 = vmatprep.subr.bf16.mxu0 0
      %310 = vmatpush1.bf16.msra.mxu0 0
      %311 = vmatprep.subr.bf16.mxu0 0
      %312 = vmatpush1.bf16.msra.mxu0 0
      %313 = vmatprep.subr.bf16.mxu0 0
      %314 = vmatpush1.bf16.msra.mxu0 0
      %315 = vmatprep.subr.bf16.mxu0 0
      %316 = vmatpush1.bf16.msra.mxu0 0
      %317 = vmatprep.subr.bf16.mxu0 0
      %318 = vmatpush1.bf16.msra.mxu0 0
      %319 = vmatprep.subr.bf16.mxu0 0
      %320 = vmatpush1.bf16.msra.mxu0 0
      %321 = vmatprep.subr.bf16.mxu0 0
      %322 = vmatpush1.bf16.msra.mxu0 0
      %323 = vmatprep.subr.bf16.mxu0 0
      %324 = vmatpush1.bf16.msra.mxu0 0
      %325 = vmatprep.subr.bf16.mxu0 0
      %326 = vmatpush1.bf16.msra.mxu0 0
      %327 = vmatprep.subr.bf16.mxu0 0
      %328 = vmatpush1.bf16.msra.mxu0 0
      %329 = vmatprep.subr.bf16.mxu0 0
      %330 = vmatpush1.bf16.msra.mxu0 0
      %331 = vmatprep.mubr.bf16.mxu0 0
      %332 = vmatmul.mubr.bf16.gmra.mrb[0].mxu0 %v297
      %v333 = vpop.f32.mrb[0].mxu0
      %v334 = vadd.f32 0.0, %v333
      %v335 = vpop.f32.mrb[0].mxu0
      %v336 = vpop.f32.mrb[0].mxu0
      %v337 = vpop.f32.mrb[0].mxu0
      %338 = vdwg.mxu0
      %v339 = vsel %vm148, %v334, 0.0
      %v340 = vrot.slane %v339, 4
      %v341 = vadd.f32 %v339, %v340
      %v342 = vrot.slane %v341, 2
      %v343 = vadd.f32 %v341, %v342
      %v344 = vrot.slane %v343, 1
      %v345 = vadd.f32 %v343, %v344
      %v346 = vmul.f32 %v345, %v199
      %v347 = vsub.f32 %v334, %v346
      %v348 = vmul.f32 %v347, %v347
      %v349 = vsel %vm148, %v348, 0.0
      %v350 = vrot.slane %v349, 4
      %v351 = vadd.f32 %v349, %v350
      %v352 = vrot.slane %v351, 2
      %v353 = vadd.f32 %v351, %v352
      %v354 = vrot.slane %v353, 1
      %v355 = vadd.f32 %v353, %v354
      %v356 = vmul.f32 %v355, %v199
      %v357 = vadd.f32 %v356, 1e-05
      %v358 = vrsqrt.pop %v357
      %v359 = vmul.f32 %v347, %v358
      %v360 = vmul.f32 %v359, 0.1
      %v361 = vmax.f32 %v359, %v360
      %v362 = vld [vmem:[%s1 + $0x60] sm:$0xff]
      %v363 = vld [vmem:[%s1 + $0x68] sm:$0xff]
      %v364 = vld [vmem:[%s1 + $0x70] sm:$0xff]
      %v365 = vld [vmem:[%s1 + $0x78] sm:$0xff]
      %v366 = vpack.c.bf16 %v361, %v361
      %v367 = vpack.c.bf16 %v363, %v362
      %v368 = vpack.c.bf16 %v365, %v364
      %v370 = vsel %vm148, %v366, 0
      %372 = vmatprep.subr.bf16.mxu0 0
      %373 = vmatpush1.bf16.msra.mxu0 %v367
      %374 = vmatprep.subr.bf16.mxu0 0
      %375 = vmatpush1.bf16.msra.mxu0 %v368
      %376 = vmatprep.subr.bf16.mxu0 0
      %377 = vmatpush1.bf16.msra.mxu0 0
      %378 = vmatprep.subr.bf16.mxu0 0
      %379 = vmatpush1.bf16.msra.mxu0 0
      %380 = vmatprep.subr.bf16.mxu0 0
      %381 = vmatpush1.bf16.msra.mxu0 0
      %382 = vmatprep.subr.bf16.mxu0 0
      %383 = vmatpush1.bf16.msra.mxu0 0
      %384 = vmatprep.subr.bf16.mxu0 0
      %385 = vmatpush1.bf16.msra.mxu0 0
      %386 = vmatprep.subr.bf16.mxu0 0
      %387 = vmatpush1.bf16.msra.mxu0 0
      %388 = vmatprep.subr.bf16.mxu0 0
      %389 = vmatpush1.bf16.msra.mxu0 0
      %390 = vmatprep.subr.bf16.mxu0 0
      %391 = vmatpush1.bf16.msra.mxu0 0
      %392 = vmatprep.subr.bf16.mxu0 0
      %393 = vmatpush1.bf16.msra.mxu0 0
      %394 = vmatprep.subr.bf16.mxu0 0
      %395 = vmatpush1.bf16.msra.mxu0 0
      %396 = vmatprep.subr.bf16.mxu0 0
      %397 = vmatpush1.bf16.msra.mxu0 0
      %398 = vmatprep.subr.bf16.mxu0 0
      %399 = vmatpush1.bf16.msra.mxu0 0
      %400 = vmatprep.subr.bf16.mxu0 0
      %401 = vmatpush1.bf16.msra.mxu0 0
      %402 = vmatprep.subr.bf16.mxu0 0
      %403 = vmatpush1.bf16.msra.mxu0 0
      %404 = vmatprep.mubr.bf16.mxu0 0
      %405 = vmatmul.mubr.bf16.gmra.mrb[0].mxu0 %v370
      %v406 = vpop.f32.mrb[0].mxu0
      %v407 = vadd.f32 0.0, %v406
      %v408 = vpop.f32.mrb[0].mxu0
      %v409 = vpop.f32.mrb[0].mxu0
      %v410 = vpop.f32.mrb[0].mxu0
      %411 = vdwg.mxu0
      %v412 = vsel %vm148, %v407, 0.0
      %v413 = vrot.slane %v412, 4
      %v414 = vadd.f32 %v412, %v413
      %v415 = vrot.slane %v414, 2
      %v416 = vadd.f32 %v414, %v415
      %v417 = vrot.slane %v416, 1
      %v418 = vadd.f32 %v416, %v417
      %v419 = vmul.f32 %v418, %v199
      %v420 = vsub.f32 %v407, %v419
      %v421 = vmul.f32 %v420, %v420
      %v422 = vsel %vm148, %v421, 0.0
      %v423 = vrot.slane %v422, 4
      %v424 = vadd.f32 %v422, %v423
      %v425 = vrot.slane %v424, 2
      %v426 = vadd.f32 %v424, %v425
      %v427 = vrot.slane %v426, 1
      %v428 = vadd.f32 %v426, %v427
      %v429 = vmul.f32 %v428, %v199
      %v430 = vadd.f32 %v429, 1e-05
      %v431 = vrsqrt.pop %v430
      %v432 = vmul.f32 %v420, %v431
      %v433 = vmul.f32 %v432, 0.1
      %v434 = vmax.f32 %v432, %v433
      %v435 = vld [vmem:[%s1 + $0x80] sm:$0xff]
      %v436 = vld [vmem:[%s1 + $0x88] sm:$0xff]
      %v437 = vld [vmem:[%s1 + $0x90] sm:$0xff]
      %v438 = vld [vmem:[%s1 + $0x98] sm:$0xff]
      %v439 = vpack.c.bf16 %v434, %v434
      %v440 = vpack.c.bf16 %v436, %v435
      %v441 = vpack.c.bf16 %v438, %v437
      %v443 = vsel %vm148, %v439, 0
      %445 = vmatprep.subr.bf16.mxu0 0
      %446 = vmatpush1.bf16.msra.mxu0 %v440
      %447 = vmatprep.subr.bf16.mxu0 0
      %448 = vmatpush1.bf16.msra.mxu0 %v441
      %449 = vmatprep.subr.bf16.mxu0 0
      %450 = vmatpush1.bf16.msra.mxu0 0
      %451 = vmatprep.subr.bf16.mxu0 0
      %452 = vmatpush1.bf16.msra.mxu0 0
      %453 = vmatprep.subr.bf16.mxu0 0
      %454 = vmatpush1.bf16.msra.mxu0 0
      %455 = vmatprep.subr.bf16.mxu0 0
      %456 = vmatpush1.bf16.msra.mxu0 0
      %457 = vmatprep.subr.bf16.mxu0 0
      %458 = vmatpush1.bf16.msra.mxu0 0
      %459 = vmatprep.subr.bf16.mxu0 0
      %460 = vmatpush1.bf16.msra.mxu0 0
      %461 = vmatprep.subr.bf16.mxu0 0
      %462 = vmatpush1.bf16.msra.mxu0 0
      %463 = vmatprep.subr.bf16.mxu0 0
      %464 = vmatpush1.bf16.msra.mxu0 0
      %465 = vmatprep.subr.bf16.mxu0 0
      %466 = vmatpush1.bf16.msra.mxu0 0
      %467 = vmatprep.subr.bf16.mxu0 0
      %468 = vmatpush1.bf16.msra.mxu0 0
      %469 = vmatprep.subr.bf16.mxu0 0
      %470 = vmatpush1.bf16.msra.mxu0 0
      %471 = vmatprep.subr.bf16.mxu0 0
      %472 = vmatpush1.bf16.msra.mxu0 0
      %473 = vmatprep.subr.bf16.mxu0 0
      %474 = vmatpush1.bf16.msra.mxu0 0
      %475 = vmatprep.subr.bf16.mxu0 0
      %476 = vmatpush1.bf16.msra.mxu0 0
      %477 = vmatprep.mubr.bf16.mxu0 0
      %478 = vmatmul.mubr.bf16.gmra.mrb[0].mxu0 %v443
      %v479 = vpop.f32.mrb[0].mxu0
      %v480 = vadd.f32 0.0, %v479
      %v481 = vpop.f32.mrb[0].mxu0
      %v482 = vpop.f32.mrb[0].mxu0
      %v483 = vpop.f32.mrb[0].mxu0
      %484 = vdwg.mxu0
      %v485 = vsel %vm148, %v480, 0.0
      %v486 = vrot.slane %v485, 4
      %v487 = vadd.f32 %v485, %v486
      %v488 = vrot.slane %v487, 2
      %v489 = vadd.f32 %v487, %v488
      %v490 = vrot.slane %v489, 1
      %v491 = vadd.f32 %v489, %v490
      %v492 = vmul.f32 %v491, %v199
      %v493 = vsub.f32 %v480, %v492
      %v494 = vmul.f32 %v493, %v493
      %v495 = vsel %vm148, %v494, 0.0
      %v496 = vrot.slane %v495, 4
      %v497 = vadd.f32 %v495, %v496
      %v498 = vrot.slane %v497, 2
      %v499 = vadd.f32 %v497, %v498
      %v500 = vrot.slane %v499, 1
      %v501 = vadd.f32 %v499, %v500
      %v502 = vmul.f32 %v501, %v199
      %v503 = vadd.f32 %v502, 1e-05
      %v504 = vrsqrt.pop %v503
      %v505 = vmul.f32 %v493, %v504
      %v506 = vmul.f32 %v505, 0.1
      %v507 = vmax.f32 %v505, %v506
      %v508 = vld [vmem:[%s1 + $0xa0] sm:$0xff]
      %v509 = vld [vmem:[%s1 + $0xa8] sm:$0xff]
      %v510 = vld [vmem:[%s1 + $0xb0] sm:$0xff]
      %v511 = vld [vmem:[%s1 + $0xb8] sm:$0xff]
      %v512 = vpack.c.bf16 %v507, %v507
      %v513 = vpack.c.bf16 %v509, %v508
      %v514 = vpack.c.bf16 %v511, %v510
      %v515 = vld [vmem:[%s1 + $0xc0] sm:$0x1]
      %v516 = vlaneseq
      %v517 = vshrl.u32 %v516, 7
      %v518 = vsub.s32 0, %v517
      %v519 = vrot.slane %v515, %v518
      %v521 = vsel %vm148, %v512, 0
      %523 = vmatprep.subr.bf16.mxu0 0
      %524 = vmatpush1.bf16.msra.mxu0 %v513
      %525 = vmatprep.subr.bf16.mxu0 0
      %526 = vmatpush1.bf16.msra.mxu0 %v514
      %527 = vmatprep.subr.bf16.mxu0 0
      %528 = vmatpush1.bf16.msra.mxu0 0
      %529 = vmatprep.subr.bf16.mxu0 0
      %530 = vmatpush1.bf16.msra.mxu0 0
      %531 = vmatprep.subr.bf16.mxu0 0
      %532 = vmatpush1.bf16.msra.mxu0 0
      %533 = vmatprep.subr.bf16.mxu0 0
      %534 = vmatpush1.bf16.msra.mxu0 0
      %535 = vmatprep.subr.bf16.mxu0 0
      %536 = vmatpush1.bf16.msra.mxu0 0
      %537 = vmatprep.subr.bf16.mxu0 0
      %538 = vmatpush1.bf16.msra.mxu0 0
      %539 = vmatprep.subr.bf16.mxu0 0
      %540 = vmatpush1.bf16.msra.mxu0 0
      %541 = vmatprep.subr.bf16.mxu0 0
      %542 = vmatpush1.bf16.msra.mxu0 0
      %543 = vmatprep.subr.bf16.mxu0 0
      %544 = vmatpush1.bf16.msra.mxu0 0
      %545 = vmatprep.subr.bf16.mxu0 0
      %546 = vmatpush1.bf16.msra.mxu0 0
      %547 = vmatprep.subr.bf16.mxu0 0
      %548 = vmatpush1.bf16.msra.mxu0 0
      %549 = vmatprep.subr.bf16.mxu0 0
      %550 = vmatpush1.bf16.msra.mxu0 0
      %551 = vmatprep.subr.bf16.mxu0 0
      %552 = vmatpush1.bf16.msra.mxu0 0
      %553 = vmatprep.subr.bf16.mxu0 0
      %554 = vmatpush1.bf16.msra.mxu0 0
      %555 = vmatprep.mubr.bf16.mxu0 0
      %556 = vmatmul.mubr.bf16.gmra.mrb[0].mxu0 %v521
      %v557 = vpop.f32.mrb[0].mxu0
      %v558 = vadd.f32 %v519, %v557
      %v559 = vpop.f32.mrb[0].mxu0
      %v560 = vpop.f32.mrb[0].mxu0
      %v561 = vpop.f32.mrb[0].mxu0
      %562 = vdwg.mxu0
      %v563 = vadd.f32 %v558, %v140
      %564 = vst.msk [vmem:[%s138] sm:$0xff] %vm148, %v563
      %p565 = scmp.lt.s32.totalorder %s13, 3
      %s566 = scalar_select %p565, %s13, 3
      %s567 = smul.addr %s566, 8
      %s568 = scalar_lea.vmem %s2, %s567
      // Predicated region
      $region29: #{kernel_md_forward_batched.1} parent=27 // pred_check
        %p569 = pneg %p78
      $region30: #{kernel_md_forward_batched.1} parent=27 // pred_check_branch
        %571 = sbr.rel (%p569) target = $region32
      $region31: #{kernel_md_forward_batched.1} parent=27 // pred_region
        _
      $region32: #{kernel_md_forward_batched.1} parent=27 // pred_fallthru
        _
    $region28: #{kernel_md_forward_batched.1} parent=5 // pred_fallthru
      _
    %p572 = scmp.le.s32.totalorder 2, %s8
    // Predicated region
    $region33: #{kernel_md_forward_batched.1} parent=5 // pred_check
      %p573 = pneg %p572
    $region34: #{kernel_md_forward_batched.1} parent=5 // pred_check_branch
      %575 = sbr.rel (%p573) target = $region36
    $region35: #{kernel_md_forward_batched.1} parent=5 // pred_region
      %s576 = ssub.s32 %s8, 2
      // Predicated region
      $region37: #{kernel_md_forward_batched.1} parent=35 // pred_check
        %p577 = pneg %p84
      $region38: #{kernel_md_forward_batched.1} parent=35 // pred_check_branch
        %579 = sbr.rel (%p577) target = $region40
      $region39: #{kernel_md_forward_batched.1} parent=35 // pred_region
        %p580 = scmp.lt.s32.totalorder %s14, 3
        %s581 = scalar_select %p580, %s14, 3
        %s582 = smul.addr %s581, 8
        %s583 = scalar_lea.vmem %s2, %s582
      $region40: #{kernel_md_forward_batched.1} parent=35 // pred_fallthru
        _
    $region36: #{kernel_md_forward_batched.1} parent=5 // pred_fallthru
      _
  $region6: #{kernel_md_forward_batched.1} parent=0 // loop_footer
    %s12 = sadd.s32 1, %s8
  $region7: #{kernel_md_forward_batched.1} parent=0 // loop_footer_branch
    %7 = sbr.rel target = $region3
  $region8: #{kernel_md_forward_batched.1} parent=0 // loop_exit
    _

</llo_original>
